<compile_context>
chip_gen: v7x
topology: tpu7x:2x2x1
jax: 0.10.0
libtpu: 0.0.40
codegen_flags: <defaults>
</compile_context>

<pallas_src>
import functools

import numpy as np
import jax
import jax.numpy as jnp
from jax.experimental import pallas as pl
from jax.experimental.pallas import tpu as pltpu


# ----------------------------------------------------------------------------
# Static parameter setup (plain numpy / JAX glue).
# ----------------------------------------------------------------------------
def _gaussian_kernel1d(ksize: int, sigma: float) -> np.ndarray:
    # matches kornia.filters.get_gaussian_kernel1d (normalized gaussian)
    x = np.arange(ksize, dtype=np.float64) - ksize // 2
    g = np.exp(-(x ** 2) / (2.0 * float(sigma) ** 2))
    return g / g.sum()


def _reflect_index(i: int, n: int) -> int:
    # torch / kornia 'reflect' padding (no edge repeat); valid while pad < n
    if i < 0:
        return -i
    if i >= n:
        return 2 * (n - 1) - i
    return i


def _blur_matrix(n: int, sigma: float) -> np.ndarray:
    """Dense (n, n) matrix applying a 1-D gaussian blur with reflect padding."""
    ksize = int(2 * round(3 * sigma) + 1)
    if ksize % 2 == 0:
        ksize += 1
    pad = ksize // 2
    # torch reflect padding requires pad < spatial size (same constraint here)
    assert pad < n, "gaussian kernel too large for this spatial size"
    k = _gaussian_kernel1d(ksize, sigma)
    mat = np.zeros((n, n), dtype=np.float64)
    for j in range(n):
        for t in range(ksize):
            mat[j, _reflect_index(j + t - pad, n)] += k[t]
    return mat.astype(np.float32)


def _vmem_limit_bytes(h: int, w: int, s: int) -> int:
    """Rough per-step VMEM budget: blocks (double-buffered), resident blur
    matrices, per-sigma intermediates; clamped to a range that is safe on
    v5e/v6e (128 MiB physical) and v7x (64 MiB physical)."""
    img = h * w * 4
    mats = s * h * h * 4 + s * w * w * 4
    est = 3 * 2 * img + 2 * mats + (6 + 3 * s) * img + 2 * 128 * 4
    est = int(est * 1.5) + (1 << 20)
    return max(32 * 1024 * 1024, min(est, 64 * 1024 * 1024))


# ----------------------------------------------------------------------------
# Pallas kernel: one (H, W) image per grid step, everything in 2-D tiles.
# ----------------------------------------------------------------------------
def _retinex_kernel(x_ref, bh_ref, bwt_ref,
                    refl_ref, illum_ref, part_ref, *, num_sigmas):
    s = num_sigmas
    _, h, w = x_ref.shape

    x = x_ref[0]                                        # (H, W) f32
    img = jnp.minimum(jnp.maximum(x, 0.001), 1.0)       # clamp(x, 0.001, 1.0)
    log_img = jnp.log(img)
    log_in = jnp.log(jnp.maximum(x, 0.001))             # clamp(x, min=0.001)

    # ---- H-direction blur for ALL sigmas in a single MXU matmul ----------
    # t[s*H + i, w] = sum_k BhAll[s*H + i, k] * img[k, w]
    t = jnp.dot(bh_ref[...], img, preferred_element_type=jnp.float32)  # (S*H, W)

    # ---- W-direction blur per sigma (2-D matmuls), accumulate log(blur) --
    log_blur_sum = None
    for si in range(s):
        t_s = t[si * h:(si + 1) * h, :]                 # (H, W) static slice
        blur_s = jnp.dot(t_s, bwt_ref[si],              # (H, W) @ (W, W)
                         preferred_element_type=jnp.float32)
        lb = jnp.log(jnp.maximum(blur_s, 0.001))
        log_blur_sum = lb if log_blur_sum is None else log_blur_sum + lb

    # retinex mean over sigmas:  refl = log_img - (1/S) * sum_s log(blur_s)
    refl = log_img - log_blur_sum * (1.0 / s)
    illum = log_in - refl

    refl_ref[0] = refl
    illum_ref[0] = illum

    # ---- per-step partial |gradient| sums (normalized globally outside) ---
    gx = refl[:, :-1] - refl[:, 1:]
    gy = refl[:-1, :] - refl[1:, :]
    igx = illum[:, :-1] - illum[:, 1:]
    igy = illum[:-1, :] - illum[1:, :]

    s_gx = jnp.sum(jnp.abs(gx))
    s_gy = jnp.sum(jnp.abs(gy))
    s_ix = jnp.sum(jnp.abs(igx))
    s_iy = jnp.sum(jnp.abs(igy))

    # lane-dense (1, 1, 128) partial-sum block: lanes 0..3 carry the 4 sums.
    lane = jax.lax.broadcasted_iota(jnp.int32, (1, 1, 128), 2)
    part_ref[...] = (jnp.where(lane == 0, s_gx, 0.0)
                     + jnp.where(lane == 1, s_gy, 0.0)
                     + jnp.where(lane == 2, s_ix, 0.0)
                     + jnp.where(lane == 3, s_iy, 0.0))


# ----------------------------------------------------------------------------
# Wrapper (equivalent of RetinexLossMSR.forward).
# ----------------------------------------------------------------------------
def retinex_loss_msr(input_img, sigma_list=None,
                     detail_weight: float = 0.0, illum_weight: float = 1.0):
    if sigma_list is None:
        sigma_list = [15, 80, 250]
    n, c, h, w = input_img.shape
    s = len(sigma_list)
    nc = n * c

    # Bh matrices concatenated along the output dim -> one matmul per step.
    bh_all = jnp.asarray(
        np.concatenate([_blur_matrix(h, sg) for sg in sigma_list], axis=0))    # (S*H, H)
    # Transposed W-blur matrices stacked per sigma.
    bwt_all = jnp.asarray(
        np.stack([_blur_matrix(w, sg).T for sg in sigma_list], axis=0))        # (S, W, W)

    x_flat = input_img.reshape(nc, h, w).astype(jnp.float32)

    kernel = functools.partial(_retinex_kernel, num_sigmas=s)

    refl, illum, partials = pl.pallas_call(
        kernel,
        grid=(nc,),
        in_specs=[
            pl.BlockSpec((1, h, w), lambda i: (i, 0, 0)),       # per-step image
            pl.BlockSpec((s * h, h), lambda i: (0, 0)),         # resident Bh_all
            pl.BlockSpec((s, w, w), lambda i: (0, 0, 0)),       # resident BwT stack
        ],
        out_specs=(
            pl.BlockSpec((1, h, w), lambda i: (i, 0, 0)),       # reflectance
            pl.BlockSpec((1, h, w), lambda i: (i, 0, 0)),       # illumination
            pl.BlockSpec((1, 1, 128), lambda i: (i, 0, 0)),     # partial sums
        ),
        out_shape=(
            jax.ShapeDtypeStruct((nc, h, w), jnp.float32),
            jax.ShapeDtypeStruct((nc, h, w), jnp.float32),
            jax.ShapeDtypeStruct((nc, 1, 128), jnp.float32),
        ),
        compiler_params=pltpu.CompilerParams(
            dimension_semantics=("parallel",),
            vmem_limit_bytes=_vmem_limit_bytes(h, w, s)),
    )(x_flat, bh_all, bwt_all)

    # Reduce per-step partial sums; normalize by GLOBAL element counts
    # (matches torch.mean over the full N*C*H*(W-1) / N*C*(H-1)*W tensors).
    sums = jnp.sum(partials, axis=(0, 1))                       # (128,)
    cnt_x = float(nc * h * (w - 1))
    cnt_y = float(nc * (h - 1) * w)
    detail_loss = sums[0] / cnt_x + sums[1] / cnt_y
    illum_loss = sums[2] / cnt_x + sums[3] / cnt_y
    loss = detail_weight * detail_loss + illum_weight * illum_loss

    aux = {
        "detail_loss": detail_loss,
        "illumination_loss": illum_loss,
        "reflectance": refl.reshape(n, c, h, w),
        "illumination": illum.reshape(n, c, h, w),
    }
    return loss, aux


# ----------------------------------------------------------------------------
# Pure-JAX reference (same blur-matrix formulation) for a sanity check.
# ----------------------------------------------------------------------------
def _reference(x, sigma_list, detail_weight, illum_weight):
    n, c, h, w = x.shape
    img = jnp.clip(x, 0.001, 1.0)
    log_img = jnp.log(img)
    comps = []
    for sg in sigma_list:
        bh = jnp.asarray(_blur_matrix(h, sg))
        bw = jnp.asarray(_blur_matrix(w, sg))
        t = jnp.einsum("hk,nckw->nchw", bh, img)
        blur = jnp.einsum("nchw,vw->nchv", t, bw)
        comps.append(log_img - jnp.log(jnp.maximum(blur, 0.001)))
    refl = jnp.mean(jnp.stack(comps), axis=0)
    gx = refl[..., :-1] - refl[..., 1:]
    gy = refl[..., :-1, :] - refl[..., 1:, :]
    loss_detail = jnp.abs(gx).mean() + jnp.abs(gy).mean()
    illum = jnp.log(jnp.maximum(x, 0.001)) - refl
    igx = illum[..., :-1] - illum[..., 1:]
    igy = illum[..., :-1, :] - illum[..., 1:, :]
    loss_illum = jnp.abs(igx).mean() + jnp.abs(igy).mean()
    loss = detail_weight * loss_detail + illum_weight * loss_illum
    return loss, loss_detail, loss_illum, refl, illum


if __name__ == "__main__":
    key = jax.random.PRNGKey(0)
    x = jax.random.uniform(key, (2, 4, 16, 16), dtype=jnp.float32)

    # The module's default sigmas (15, 80, 250) imply gaussian kernels far
    # larger than a 16x16 test image (torch reflect-pad would reject them),
    # so the test uses the constructor's sigma_list argument with sigmas that
    # fit the small spatial size.  Semantics are identical.
    sigma_list = [1.0, 2.0]
    detail_weight, illum_weight = 0.25, 1.0

    loss, aux = retinex_loss_msr(x, sigma_list=sigma_list,
                                 detail_weight=detail_weight,
                                 illum_weight=illum_weight)
    jax.block_until_ready((loss, aux))

    ref_loss, ref_detail, ref_illum_loss, ref_refl, ref_illum = _reference(
        x, sigma_list, detail_weight, illum_weight)

    assert np.allclose(np.asarray(loss), np.asarray(ref_loss),
                       rtol=1e-4, atol=1e-4), (loss, ref_loss)
    assert np.allclose(np.asarray(aux["detail_loss"]), np.asarray(ref_detail),
                       rtol=1e-4, atol=1e-4)
    assert np.allclose(np.asarray(aux["illumination_loss"]),
                       np.asarray(ref_illum_loss), rtol=1e-4, atol=1e-4)
    assert np.allclose(np.asarray(aux["reflectance"]), np.asarray(ref_refl),
                       rtol=1e-4, atol=1e-4)
    assert np.allclose(np.asarray(aux["illumination"]), np.asarray(ref_illum),
                       rtol=1e-4, atol=1e-4)
    assert aux["reflectance"].shape == x.shape
    assert aux["illumination"].shape == x.shape

    print("KERNEL_OK")
</pallas_src>

<mosaic_0001>
module attributes {stable_mosaic.version = 11 : i64} {
  func.func @_retinex_kernel(%arg0: i32, %arg1: memref<1x16x16xf32, #tpu.memory_space<vmem>>, %arg2: memref<32x16xf32, #tpu.memory_space<vmem>>, %arg3: memref<2x16x16xf32, #tpu.memory_space<vmem>>, %arg4: memref<1x16x16xf32, #tpu.memory_space<vmem>>, %arg5: memref<1x16x16xf32, #tpu.memory_space<vmem>>, %arg6: memref<1x1x128xf32, #tpu.memory_space<vmem>>) attributes {dimension_semantics = [#tpu.dimension_semantics<parallel>], iteration_bounds = array<i64: 8>, scalar_prefetch = 0 : i64, scratch_operands = 0 : i64, tpu.core_type = #tpu.core_type<tc>, window_params = [{transform_indices = @transform_0, window_bounds = array<i64: 1, 16, 16>}, {pipeline_mode = #tpu.pipeline_mode<synchronous>, transform_indices = @transform_1, window_bounds = array<i64: 32, 16>}, {pipeline_mode = #tpu.pipeline_mode<synchronous>, transform_indices = @transform_2, window_bounds = array<i64: 2, 16, 16>}, {transform_indices = @transform_3, window_bounds = array<i64: 1, 16, 16>}, {transform_indices = @transform_4, window_bounds = array<i64: 1, 16, 16>}, {transform_indices = @transform_5, window_bounds = array<i64: 1, 1, 128>}]} {
    %c0 = arith.constant 0 : index
    %c0_0 = arith.constant 0 : index
    %c0_1 = arith.constant 0 : index
    %0 = vector.load %arg1[%c0, %c0_0, %c0_1] : memref<1x16x16xf32, #tpu.memory_space<vmem>>, vector<1x16x16xf32>
    %1 = vector.shape_cast %0 : vector<1x16x16xf32> to vector<16x16xf32>
    %cst = arith.constant 1.000000e-03 : f32
    %2 = vector.broadcast %cst : f32 to vector<16x16xf32>
    %3 = arith.maximumf %1, %2 : vector<16x16xf32>
    %cst_2 = arith.constant 1.000000e+00 : f32
    %4 = vector.broadcast %cst_2 : f32 to vector<16x16xf32>
    %5 = arith.minimumf %3, %4 : vector<16x16xf32>
    %6 = math.log %5 : vector<16x16xf32>
    %cst_3 = arith.constant 1.000000e-03 : f32
    %7 = vector.broadcast %cst_3 : f32 to vector<16x16xf32>
    %8 = arith.maximumf %1, %7 : vector<16x16xf32>
    %9 = math.log %8 : vector<16x16xf32>
    %c0_4 = arith.constant 0 : index
    %c0_5 = arith.constant 0 : index
    %10 = vector.load %arg2[%c0_4, %c0_5] : memref<32x16xf32, #tpu.memory_space<vmem>>, vector<32x16xf32>
    %cst_6 = arith.constant dense<0.000000e+00> : vector<32x16xf32>
    %11 = tpu.matmul %10, %5, %cst_6 {dimension_numbers = #tpu.dot_dimension_numbers<[1], [0], [0], [1], [0, 0, 1, 1], [], []>} : vector<32x16xf32>, vector<16x16xf32>, vector<32x16xf32> -> vector<32x16xf32>
    %12 = vector.extract_strided_slice %11 {offsets = [0, 0], sizes = [16, 16], strides = [1, 1]} : vector<32x16xf32> to vector<16x16xf32>
    %c0_7 = arith.constant 0 : index
    %c0_8 = arith.constant 0 : index
    %c0_9 = arith.constant 0 : index
    %13 = vector.load %arg3[%c0_7, %c0_8, %c0_9] : memref<2x16x16xf32, #tpu.memory_space<vmem>>, vector<1x16x16xf32>
    %14 = vector.shape_cast %13 : vector<1x16x16xf32> to vector<16x16xf32>
    %cst_10 = arith.constant dense<0.000000e+00> : vector<16x16xf32>
    %15 = tpu.matmul %12, %14, %cst_10 {dimension_numbers = #tpu.dot_dimension_numbers<[1], [0], [0], [1], [0, 0, 1, 1], [], []>} : vector<16x16xf32>, vector<16x16xf32>, vector<16x16xf32> -> vector<16x16xf32>
    %cst_11 = arith.constant 1.000000e-03 : f32
    %16 = vector.broadcast %cst_11 : f32 to vector<16x16xf32>
    %17 = arith.maximumf %15, %16 : vector<16x16xf32>
    %18 = math.log %17 : vector<16x16xf32>
    %19 = vector.extract_strided_slice %11 {offsets = [16, 0], sizes = [16, 16], strides = [1, 1]} : vector<32x16xf32> to vector<16x16xf32>
    %c1 = arith.constant 1 : index
    %c0_12 = arith.constant 0 : index
    %c0_13 = arith.constant 0 : index
    %20 = vector.load %arg3[%c1, %c0_12, %c0_13] : memref<2x16x16xf32, #tpu.memory_space<vmem>>, vector<1x16x16xf32>
    %21 = vector.shape_cast %20 : vector<1x16x16xf32> to vector<16x16xf32>
    %cst_14 = arith.constant dense<0.000000e+00> : vector<16x16xf32>
    %22 = tpu.matmul %19, %21, %cst_14 {dimension_numbers = #tpu.dot_dimension_numbers<[1], [0], [0], [1], [0, 0, 1, 1], [], []>} : vector<16x16xf32>, vector<16x16xf32>, vector<16x16xf32> -> vector<16x16xf32>
    %cst_15 = arith.constant 1.000000e-03 : f32
    %23 = vector.broadcast %cst_15 : f32 to vector<16x16xf32>
    %24 = arith.maximumf %22, %23 : vector<16x16xf32>
    %25 = math.log %24 : vector<16x16xf32>
    %26 = arith.addf %18, %25 : vector<16x16xf32>
    %cst_16 = arith.constant 5.000000e-01 : f32
    %27 = vector.broadcast %cst_16 : f32 to vector<16x16xf32>
    %28 = arith.mulf %26, %27 : vector<16x16xf32>
    %29 = arith.subf %6, %28 : vector<16x16xf32>
    %30 = arith.subf %9, %29 : vector<16x16xf32>
    %c0_17 = arith.constant 0 : index
    %c0_18 = arith.constant 0 : index
    %c0_19 = arith.constant 0 : index
    %31 = vector.load %arg4[%c0_17, %c0_18, %c0_19] : memref<1x16x16xf32, #tpu.memory_space<vmem>>, vector<1x16x16xf32>
    %32 = vector.shape_cast %31 : vector<1x16x16xf32> to vector<16x16xf32>
    %33 = vector.shape_cast %29 : vector<16x16xf32> to vector<1x16x16xf32>
    tpu.vector_store %arg4[%c0_17, %c0_18, %c0_19], %33 {strides = array<i32>} : memref<1x16x16xf32, #tpu.memory_space<vmem>>, vector<1x16x16xf32>,
    %c0_20 = arith.constant 0 : index
    %c0_21 = arith.constant 0 : index
    %c0_22 = arith.constant 0 : index
    %34 = vector.load %arg5[%c0_20, %c0_21, %c0_22] : memref<1x16x16xf32, #tpu.memory_space<vmem>>, vector<1x16x16xf32>
    %35 = vector.shape_cast %34 : vector<1x16x16xf32> to vector<16x16xf32>
    %36 = vector.shape_cast %30 : vector<16x16xf32> to vector<1x16x16xf32>
    tpu.vector_store %arg5[%c0_20, %c0_21, %c0_22], %36 {strides = array<i32>} : memref<1x16x16xf32, #tpu.memory_space<vmem>>, vector<1x16x16xf32>,
    %37 = vector.extract_strided_slice %29 {offsets = [0, 0], sizes = [16, 15], strides = [1, 1]} : vector<16x16xf32> to vector<16x15xf32>
    %38 = vector.extract_strided_slice %29 {offsets = [0, 1], sizes = [16, 15], strides = [1, 1]} : vector<16x16xf32> to vector<16x15xf32>
    %39 = arith.subf %37, %38 : vector<16x15xf32>
    %40 = vector.extract_strided_slice %29 {offsets = [0, 0], sizes = [15, 16], strides = [1, 1]} : vector<16x16xf32> to vector<15x16xf32>
    %41 = vector.extract_strided_slice %29 {offsets = [1, 0], sizes = [15, 16], strides = [1, 1]} : vector<16x16xf32> to vector<15x16xf32>
    %42 = arith.subf %40, %41 : vector<15x16xf32>
    %43 = vector.extract_strided_slice %30 {offsets = [0, 0], sizes = [16, 15], strides = [1, 1]} : vector<16x16xf32> to vector<16x15xf32>
    %44 = vector.extract_strided_slice %30 {offsets = [0, 1], sizes = [16, 15], strides = [1, 1]} : vector<16x16xf32> to vector<16x15xf32>
    %45 = arith.subf %43, %44 : vector<16x15xf32>
    %46 = vector.extract_strided_slice %30 {offsets = [0, 0], sizes = [15, 16], strides = [1, 1]} : vector<16x16xf32> to vector<15x16xf32>
    %47 = vector.extract_strided_slice %30 {offsets = [1, 0], sizes = [15, 16], strides = [1, 1]} : vector<16x16xf32> to vector<15x16xf32>
    %48 = arith.subf %46, %47 : vector<15x16xf32>
    %49 = math.absf %39 : vector<16x15xf32>
    %50 = vector.shape_cast %49 : vector<16x15xf32> to vector<1x16x15xf32>
    %cst_23 = arith.constant dense<0.000000e+00> : vector<1xf32>
    %51 = vector.multi_reduction <add>, %50, %cst_23 [1, 2] : vector<1x16x15xf32> to vector<1xf32>
    %52 = vector.shape_cast %51 : vector<1xf32> to vector<1x1x1xf32>
    %53 = vector.extract %52[0, 0, 0] : f32 from vector<1x1x1xf32>
    %54 = math.absf %42 : vector<15x16xf32>
    %55 = vector.shape_cast %54 : vector<15x16xf32> to vector<1x15x16xf32>
    %cst_24 = arith.constant dense<0.000000e+00> : vector<1xf32>
    %56 = vector.multi_reduction <add>, %55, %cst_24 [1, 2] : vector<1x15x16xf32> to vector<1xf32>
    %57 = vector.shape_cast %56 : vector<1xf32> to vector<1x1x1xf32>
    %58 = vector.extract %57[0, 0, 0] : f32 from vector<1x1x1xf32>
    %59 = math.absf %45 : vector<16x15xf32>
    %60 = vector.shape_cast %59 : vector<16x15xf32> to vector<1x16x15xf32>
    %cst_25 = arith.constant dense<0.000000e+00> : vector<1xf32>
    %61 = vector.multi_reduction <add>, %60, %cst_25 [1, 2] : vector<1x16x15xf32> to vector<1xf32>
    %62 = vector.shape_cast %61 : vector<1xf32> to vector<1x1x1xf32>
    %63 = vector.extract %62[0, 0, 0] : f32 from vector<1x1x1xf32>
    %64 = math.absf %48 : vector<15x16xf32>
    %65 = vector.shape_cast %64 : vector<15x16xf32> to vector<1x15x16xf32>
    %cst_26 = arith.constant dense<0.000000e+00> : vector<1xf32>
    %66 = vector.multi_reduction <add>, %65, %cst_26 [1, 2] : vector<1x15x16xf32> to vector<1xf32>
    %67 = vector.shape_cast %66 : vector<1xf32> to vector<1x1x1xf32>
    %68 = vector.extract %67[0, 0, 0] : f32 from vector<1x1x1xf32>
    %69 = tpu.iota {dimensions = array<i32: 2>} : vector<1x1x128xi32>
    %c0_i32 = arith.constant 0 : i32
    %70 = vector.broadcast %c0_i32 : i32 to vector<1x1x128xi32>
    %71 = arith.cmpi eq, %69, %70 : vector<1x1x128xi32>
    %cst_27 = arith.constant 0.000000e+00 : f32
    %72 = vector.broadcast %53 : f32 to vector<1x1x128xf32>
    %73 = vector.broadcast %cst_27 : f32 to vector<1x1x128xf32>
    %74 = arith.select %71, %72, %73 : vector<1x1x128xi1>, vector<1x1x128xf32>
    %c1_i32 = arith.constant 1 : i32
    %75 = vector.broadcast %c1_i32 : i32 to vector<1x1x128xi32>
    %76 = arith.cmpi eq, %69, %75 : vector<1x1x128xi32>
    %cst_28 = arith.constant 0.000000e+00 : f32
    %77 = vector.broadcast %58 : f32 to vector<1x1x128xf32>
    %78 = vector.broadcast %cst_28 : f32 to vector<1x1x128xf32>
    %79 = arith.select %76, %77, %78 : vector<1x1x128xi1>, vector<1x1x128xf32>
    %80 = arith.addf %74, %79 : vector<1x1x128xf32>
    %c2_i32 = arith.constant 2 : i32
    %81 = vector.broadcast %c2_i32 : i32 to vector<1x1x128xi32>
    %82 = arith.cmpi eq, %69, %81 : vector<1x1x128xi32>
    %cst_29 = arith.constant 0.000000e+00 : f32
    %83 = vector.broadcast %63 : f32 to vector<1x1x128xf32>
    %84 = vector.broadcast %cst_29 : f32 to vector<1x1x128xf32>
    %85 = arith.select %82, %83, %84 : vector<1x1x128xi1>, vector<1x1x128xf32>
    %86 = arith.addf %80, %85 : vector<1x1x128xf32>
    %c3_i32 = arith.constant 3 : i32
    %87 = vector.broadcast %c3_i32 : i32 to vector<1x1x128xi32>
    %88 = arith.cmpi eq, %69, %87 : vector<1x1x128xi32>
    %cst_30 = arith.constant 0.000000e+00 : f32
    %89 = vector.broadcast %68 : f32 to vector<1x1x128xf32>
    %90 = vector.broadcast %cst_30 : f32 to vector<1x1x128xf32>
    %91 = arith.select %88, %89, %90 : vector<1x1x128xi1>, vector<1x1x128xf32>
    %92 = arith.addf %86, %91 : vector<1x1x128xf32>
    %c0_31 = arith.constant 0 : index
    %c0_32 = arith.constant 0 : index
    %c0_33 = arith.constant 0 : index
    %93 = vector.load %arg6[%c0_31, %c0_32, %c0_33] : memref<1x1x128xf32, #tpu.memory_space<vmem>>, vector<1x1x128xf32>
    tpu.vector_store %arg6[%c0_31, %c0_32, %c0_33], %92 {strides = array<i32>} : memref<1x1x128xf32, #tpu.memory_space<vmem>>, vector<1x1x128xf32>,
    return
  }
  func.func @transform_0(%arg0: i32) -> (i32, i32, i32) {
    %c0_i32 = arith.constant 0 : i32
    %c0_i32_0 = arith.constant 0 : i32
    %c0_i32_1 = arith.constant 0 : i32
    return %arg0, %c0_i32, %c0_i32_0 : i32, i32, i32
  }
  func.func @transform_1(%arg0: i32) -> (i32, i32) {
    %c0_i32 = arith.constant 0 : i32
    %c0_i32_0 = arith.constant 0 : i32
    %c0_i32_1 = arith.constant 0 : i32
    return %c0_i32, %c0_i32_0 : i32, i32
  }
  func.func @transform_2(%arg0: i32) -> (i32, i32, i32) {
    %c0_i32 = arith.constant 0 : i32
    %c0_i32_0 = arith.constant 0 : i32
    %c0_i32_1 = arith.constant 0 : i32
    %c0_i32_2 = arith.constant 0 : i32
    return %c0_i32, %c0_i32_0, %c0_i32_1 : i32, i32, i32
  }
  func.func @transform_3(%arg0: i32) -> (i32, i32, i32) {
    %c0_i32 = arith.constant 0 : i32
    %c0_i32_0 = arith.constant 0 : i32
    %c0_i32_1 = arith.constant 0 : i32
    return %arg0, %c0_i32, %c0_i32_0 : i32, i32, i32
  }
  func.func @transform_4(%arg0: i32) -> (i32, i32, i32) {
    %c0_i32 = arith.constant 0 : i32
    %c0_i32_0 = arith.constant 0 : i32
    %c0_i32_1 = arith.constant 0 : i32
    return %arg0, %c0_i32, %c0_i32_0 : i32, i32, i32
  }
  func.func @transform_5(%arg0: i32) -> (i32, i32, i32) {
    %c0_i32 = arith.constant 0 : i32
    %c0_i32_0 = arith.constant 0 : i32
    %c0_i32_1 = arith.constant 0 : i32
    return %arg0, %c0_i32, %c0_i32_0 : i32, i32, i32
  }
}

</mosaic_0001>

<llo_original>
// kernel: tpu_custom_call.1
$region0: #{tpu_custom_call.1}
  #allocation0 [shape = 'u32[]', space=smem, size = 0x4, offset = 0x4, fixed_abs, tag = 'smem constant byte address 0x4 - core index']
  #allocation1 [shape = 'u32[144,128]{1,0:T(1,128)}', space=vmem, size = 0x12000, scoped, tag = 'internal scratch']
  %s0 = inlined_call_operand.hbm [shape: f32[8,16,16], index: 0, kind: input, shape index: {}]
  %s1 = inlined_call_operand.vmem [shape: f32[32,16], index: 1, kind: input, shape index: {}]
  %s2 = inlined_call_operand.vmem [shape: f32[2,16,16], index: 2, kind: input, shape index: {}]
  %s3 = inlined_call_operand.hbm [shape: f32[8,16,16], index: 3, kind: output, shape index: {0}]
  %s4 = inlined_call_operand.hbm [shape: f32[8,16,16], index: 4, kind: output, shape index: {1}]
  %s5 = inlined_call_operand.hbm [shape: f32[8,1,128], index: 5, kind: output, shape index: {2}]
  %6 = xla_tuple %s3, %s4, %s5
  %s7 = sld [smem:[#allocation0]]
  $region65: #{tpu_custom_call.1} parent=0
    _
  %s9 = ssub.s32 1, %s7
  %s10 = scalar_select 0, %s9, %s7
  $region1: #{tpu_custom_call.1} parent=0
    #allocation2 [shape = 'u8[16384]{0}', space=vmem, size = 0x4000, scoped, tag = 'input window, operand 0']
    #allocation3 [shape = 's32[2]{0}', space=sflag, size = 0x8, scoped, tag = 'scoped memory for tpu_custom_call.1']
    #allocation4 [shape = 's32[2]{0}', space=sflag, size = 0x8, scoped, tag = 'scoped memory for tpu_custom_call.1']
    #allocation5 [shape = 'u8[16384]{0}', space=vmem, size = 0x4000, scoped, tag = 'output window, operand 0']
    #allocation6 [shape = 'u8[16384]{0}', space=vmem, size = 0x4000, scoped, tag = 'output window, operand 1']
    #allocation7 [shape = 's32[2]{0}', space=sflag, size = 0x8, scoped, tag = 'scoped memory for tpu_custom_call.1']
    #allocation8 [shape = 'u8[1024]{0}', space=vmem, size = 0x400, scoped, tag = 'output window, operand 2']
    %11 = vsyncpa [#allocation3], 0
    %s12 = scalar_lea.sflag [#allocation3], 1
    %13 = vsyncpa %s12, 0
    %14 = vsyncpa [#allocation4], 0
    %s15 = scalar_lea.sflag [#allocation4], 1
    %16 = vsyncpa %s15, 0
    %17 = vsyncpa [#allocation7], 0
    %s18 = scalar_lea.sflag [#allocation7], 1
    %19 = vsyncpa %s18, 0
    loop: start=0, step=1, limit=10
    $region2: #{tpu_custom_call.1} parent=1 // loop_pre_header
      _
    $region3: #{tpu_custom_call.1} parent=1 // loop_header
      %s21 = sphi 0, %s25
      %p22 = scmp.ge.s32.totalorder %s21, 10
      %s31 = sphi 0, %s33
      %s34 = sphi 0, %s31
      %s35 = sphi 0, %s34
      %s51 = sphi 0, %s35
      %s55 = sphi 0, %s55
      %s57 = sphi 0, %s55
      %s58 = sphi 0, %s57
      %s72 = sphi 0, %s58
      %s76 = sphi 0, %s76
      %s78 = sphi 0, %s76
      %s79 = sphi 0, %s78
      %s93 = sphi 0, %s79
      %s99 = sphi 0, %s101
      %s102 = sphi 0, %s99
      %s103 = sphi 0, %s102
      %s119 = sphi 0, %s103
      %s125 = sphi 0, %s127
      %s128 = sphi 0, %s125
      %s129 = sphi 0, %s128
      %s145 = sphi 0, %s129
      %s151 = sphi 0, %s153
      %s154 = sphi 0, %s151
      %s155 = sphi 0, %s154
      %s171 = sphi 0, %s155
    $region4: #{tpu_custom_call.1} parent=1 // loop_header_branch
      %24 = sbr.rel (%p22) target = $region8
    $region5: #{tpu_custom_call.1} parent=1 // loop_body
      %s26 = ssub.s32 %s21, 1
      %s27 = ssub.s32 %s21, 2
      %s28 = sadd.s32 %s21, 1
      %s29 = ssub.s32 %s21, %s28
      %p30 = scmp.eq.s32.totalorder %s29, 0
      %s32 = sadd.s32 %s31, 1
      %s33 = scalar_select %p30, %s31, %s32
      %p36 = pneg %p30
      %p37 = scmp.eq.s32.totalorder %s21, 7
      %p38 = por %p36, %p37
      %p39 = scmp.ne.s32.totalorder %s31, %s34
      %p40 = scmp.eq.s32.totalorder %s21, 0
      %p41 = por %p39, %p40
      %p42 = scmp.ne.s32.totalorder %s31, %s34
      %p43 = scmp.eq.s32.totalorder %s26, 7
      %p44 = por %p42, %p43
      %p45 = scmp.ne.s32.totalorder %s34, %s35
      %p46 = scmp.eq.s32.totalorder %s26, 0
      %p47 = por %p45, %p46
      %p48 = scmp.ne.s32.totalorder %s34, %s35
      %p49 = scmp.eq.s32.totalorder %s27, 7
      %p50 = por %p48, %p49
      %p52 = scmp.ne.s32.totalorder %s35, %s51
      %p53 = scmp.eq.s32.totalorder %s27, 0
      %p54 = por %p52, %p53
      %s56 = sadd.s32 %s55, 1
      %p59 = scmp.eq.s32.totalorder %s21, 7
      %p60 = scmp.ne.s32.totalorder %s55, %s57
      %p61 = scmp.eq.s32.totalorder %s21, 0
      %p62 = por %p60, %p61
      %p63 = scmp.ne.s32.totalorder %s55, %s57
      %p64 = scmp.eq.s32.totalorder %s26, 7
      %p65 = por %p63, %p64
      %p66 = scmp.ne.s32.totalorder %s57, %s58
      %p67 = scmp.eq.s32.totalorder %s26, 0
      %p68 = por %p66, %p67
      %p69 = scmp.ne.s32.totalorder %s57, %s58
      %p70 = scmp.eq.s32.totalorder %s27, 7
      %p71 = por %p69, %p70
      %p73 = scmp.ne.s32.totalorder %s58, %s72
      %p74 = scmp.eq.s32.totalorder %s27, 0
      %p75 = por %p73, %p74
      %s77 = sadd.s32 %s76, 1
      %p80 = scmp.eq.s32.totalorder %s21, 7
      %p81 = scmp.ne.s32.totalorder %s76, %s78
      %p82 = scmp.eq.s32.totalorder %s21, 0
      %p83 = por %p81, %p82
      %p84 = scmp.ne.s32.totalorder %s76, %s78
      %p85 = scmp.eq.s32.totalorder %s26, 7
      %p86 = por %p84, %p85
      %p87 = scmp.ne.s32.totalorder %s78, %s79
      %p88 = scmp.eq.s32.totalorder %s26, 0
      %p89 = por %p87, %p88
      %p90 = scmp.ne.s32.totalorder %s78, %s79
      %p91 = scmp.eq.s32.totalorder %s27, 7
      %p92 = por %p90, %p91
      %p94 = scmp.ne.s32.totalorder %s79, %s93
      %p95 = scmp.eq.s32.totalorder %s27, 0
      %p96 = por %p94, %p95
      %s97 = ssub.s32 %s21, %s28
      %p98 = scmp.eq.s32.totalorder %s97, 0
      %s100 = sadd.s32 %s99, 1
      %s101 = scalar_select %p98, %s99, %s100
      %p104 = pneg %p98
      %p105 = scmp.eq.s32.totalorder %s21, 7
      %p106 = por %p104, %p105
      %p107 = scmp.ne.s32.totalorder %s99, %s102
      %p108 = scmp.eq.s32.totalorder %s21, 0
      %p109 = por %p107, %p108
      %p110 = scmp.ne.s32.totalorder %s99, %s102
      %p111 = scmp.eq.s32.totalorder %s26, 7
      %p112 = por %p110, %p111
      %p113 = scmp.ne.s32.totalorder %s102, %s103
      %p114 = scmp.eq.s32.totalorder %s26, 0
      %p115 = por %p113, %p114
      %p116 = scmp.ne.s32.totalorder %s102, %s103
      %p117 = scmp.eq.s32.totalorder %s27, 7
      %p118 = por %p116, %p117
      %p120 = scmp.ne.s32.totalorder %s103, %s119
      %p121 = scmp.eq.s32.totalorder %s27, 0
      %p122 = por %p120, %p121
      %s123 = ssub.s32 %s21, %s28
      %p124 = scmp.eq.s32.totalorder %s123, 0
      %s126 = sadd.s32 %s125, 1
      %s127 = scalar_select %p124, %s125, %s126
      %p130 = pneg %p124
      %p131 = scmp.eq.s32.totalorder %s21, 7
      %p132 = por %p130, %p131
      %p133 = scmp.ne.s32.totalorder %s125, %s128
      %p134 = scmp.eq.s32.totalorder %s21, 0
      %p135 = por %p133, %p134
      %p136 = scmp.ne.s32.totalorder %s125, %s128
      %p137 = scmp.eq.s32.totalorder %s26, 7
      %p138 = por %p136, %p137
      %p139 = scmp.ne.s32.totalorder %s128, %s129
      %p140 = scmp.eq.s32.totalorder %s26, 0
      %p141 = por %p139, %p140
      %p142 = scmp.ne.s32.totalorder %s128, %s129
      %p143 = scmp.eq.s32.totalorder %s27, 7
      %p144 = por %p142, %p143
      %p146 = scmp.ne.s32.totalorder %s129, %s145
      %p147 = scmp.eq.s32.totalorder %s27, 0
      %p148 = por %p146, %p147
      %s149 = ssub.s32 %s21, %s28
      %p150 = scmp.eq.s32.totalorder %s149, 0
      %s152 = sadd.s32 %s151, 1
      %s153 = scalar_select %p150, %s151, %s152
      %p156 = pneg %p150
      %p157 = scmp.eq.s32.totalorder %s21, 7
      %p158 = por %p156, %p157
      %p159 = scmp.ne.s32.totalorder %s151, %s154
      %p160 = scmp.eq.s32.totalorder %s21, 0
      %p161 = por %p159, %p160
      %p162 = scmp.ne.s32.totalorder %s151, %s154
      %p163 = scmp.eq.s32.totalorder %s26, 7
      %p164 = por %p162, %p163
      %p165 = scmp.ne.s32.totalorder %s154, %s155
      %p166 = scmp.eq.s32.totalorder %s26, 0
      %p167 = por %p165, %p166
      %p168 = scmp.ne.s32.totalorder %s154, %s155
      %p169 = scmp.eq.s32.totalorder %s27, 7
      %p170 = por %p168, %p169
      %p172 = scmp.ne.s32.totalorder %s155, %s171
      %p173 = scmp.eq.s32.totalorder %s27, 0
      %p174 = por %p172, %p173
      %p175 = scmp.le.s32.totalorder 1, %s21
      %p176 = scmp.lt.s32.totalorder %s21, 9
      %p177 = pnand %p175, %p176
      %p178 = pneg %p177
      // Predicated region
      $region9: #{tpu_custom_call.1} parent=5 // pred_check
        _
      $region10: #{tpu_custom_call.1} parent=5 // pred_check_branch
        %180 = sbr.rel (%p177) target = $region12
      $region11: #{tpu_custom_call.1} parent=5 // pred_region
        %s181 = ssub.s32 %s21, 1
        // Predicated region
        $region13: #{tpu_custom_call.1} parent=11 // pred_check
          %p182 = pneg %p68
        $region14: #{tpu_custom_call.1} parent=11 // pred_check_branch
          %184 = sbr.rel (%p182) target = $region16
        $region15: #{tpu_custom_call.1} parent=11 // pred_region
          _
        $region16: #{tpu_custom_call.1} parent=11 // pred_fallthru
          _
        // Predicated region
        $region17: #{tpu_custom_call.1} parent=11 // pred_check
          %p185 = pneg %p89
        $region18: #{tpu_custom_call.1} parent=11 // pred_check_branch
          %187 = sbr.rel (%p185) target = $region20
        $region19: #{tpu_custom_call.1} parent=11 // pred_region
          _
        $region20: #{tpu_custom_call.1} parent=11 // pred_fallthru
          _
      $region12: #{tpu_custom_call.1} parent=5 // pred_fallthru
        _
      %p188 = scmp.lt.s32.totalorder %s21, 8
      // Predicated region
      $region21: #{tpu_custom_call.1} parent=5 // pred_check
        %p189 = pneg %p188
      $region22: #{tpu_custom_call.1} parent=5 // pred_check_branch
        %191 = sbr.rel (%p189) target = $region24
      $region23: #{tpu_custom_call.1} parent=5 // pred_region
        // Predicated region
        $region25: #{tpu_custom_call.1} parent=23 // pred_check
          %p192 = pneg %p41
        $region26: #{tpu_custom_call.1} parent=23 // pred_check_branch
          %194 = sbr.rel (%p192) target = $region28
        $region27: #{tpu_custom_call.1} parent=23 // pred_region
          %s195 = sand.u32 %s31, 1
          %s196 = scalar_lea.sflag [#allocation3], %s195
          %s197 = sand.u32 %s31, 1
          %s198 = smul.addr %s197, 16
          %s199 = scalar_lea.vmem [#allocation2], %s198
          %s201 = ssub.s32 256, 256
          %202 = vsyncadd %s196, %s201
          %s203 = smul.addr %s21, 2
          %s204 = smul.addr %s203, 128
          %s205 = scalar_lea.hbm %s0, %s204
          %s206 = sshll.u32 %s199, 4
          %s207 = int_to_ptr.vmem [resolvable:$true] %s206
          %212 = dma.hbm_to_vmem [thread:$0]  %s205, 256, %s207, %s196, 128, 128, 8
        $region28: #{tpu_custom_call.1} parent=23 // pred_fallthru
          _
      $region24: #{tpu_custom_call.1} parent=5 // pred_fallthru
        _
      %p213 = scmp.le.s32.totalorder 1, %s21
      %p214 = scmp.lt.s32.totalorder %s21, 9
      %p215 = pnand %p213, %p214
      %p216 = pneg %p215
      // Predicated region
      $region29: #{tpu_custom_call.1} parent=5 // pred_check
        _
      $region30: #{tpu_custom_call.1} parent=5 // pred_check_branch
        %218 = sbr.rel (%p215) target = $region32
      $region31: #{tpu_custom_call.1} parent=5 // pred_region
        %s219 = ssub.s32 %s21, 1
        %s220 = sand.u32 %s34, 1
        %s221 = scalar_lea.sflag [#allocation3], %s220
        %s222 = sand.u32 %s34, 1
        %s223 = smul.addr %s222, 16
        %s224 = scalar_lea.vmem [#allocation2], %s223
        // Predicated region
        $region33: #{tpu_custom_call.1} parent=31 // pred_check
          %p225 = pneg %p47
        $region34: #{tpu_custom_call.1} parent=31 // pred_check_branch
          %227 = sbr.rel (%p225) target = $region36
        $region35: #{tpu_custom_call.1} parent=31 // pred_region
          %228 = dma.done %s221, 256
        $region36: #{tpu_custom_call.1} parent=31 // pred_fallthru
          _
        %s229 = sand.u32 %s34, 1
        %s230 = scalar_lea.sflag [#allocation3], %s229
        %s231 = sand.u32 %s34, 1
        %s232 = smul.addr %s231, 16
        %s233 = scalar_lea.vmem [#allocation2], %s232
        %p234 = pneg %p47
        %p235 = pneg %p44
        %p236 = pneg %p68
        %p237 = pneg %p65
        %p238 = pneg %p89
        %p239 = pneg %p86
        %p240 = pneg %p115
        %p241 = pneg %p112
        %s242 = sand.u32 %s102, 1
        %s243 = scalar_lea.sflag [#allocation4], %s242
        %s244 = sand.u32 %s102, 1
        %s245 = smul.addr %s244, 16
        %s246 = scalar_lea.vmem [#allocation5], %s245
        %p247 = pneg %p141
        %p248 = pneg %p138
        %s249 = sand.u32 %s26, 1
        %s250 = scalar_lea.sflag [#allocation7], %s249
        %s251 = sand.u32 %s128, 1
        %s252 = smul.addr %s251, 16
        %s253 = scalar_lea.vmem [#allocation6], %s252
        %p254 = pneg %p167
        %p255 = pneg %p164
        %s256 = sand.u32 %s26, 1
        %s257 = scalar_lea.sflag [#allocation7], %s256
        %s258 = sand.u32 %s154, 1
        %s259 = scalar_lea.vmem [#allocation8], %s258
        %v260 = vld [vmem:[%s224] sm:$0xff]
        %v261 = vld [vmem:[%s224 + $0x8] sm:$0xff]
        %v262 = vmax.f32 %v260, 0.001
        %v263 = vmax.f32 %v261, 0.001
        %v264 = vmin.f32 %v262, 1.0
        %v265 = vmin.f32 %v263, 1.0
        %v266 = vlog2.pop %v264
        %v267 = vmul.f32 %v266, 0.6931472
        %v268 = vlog2.pop %v265
        %v269 = vmul.f32 %v268, 0.6931472
        %v270 = vlog2.pop %v262
        %v271 = vmul.f32 %v270, 0.6931472
        %v272 = vlog2.pop %v263
        %v273 = vmul.f32 %v272, 0.6931472
        %v274 = vld [vmem:[%s1] sm:$0xff]
        %v275 = vld [vmem:[%s1 + $0x8] sm:$0xff]
        %v276 = vld [vmem:[%s1 + $0x10] sm:$0xff]
        %v277 = vld [vmem:[%s1 + $0x18] sm:$0xff]
        %vm278 = vcmask 130048
        %v280 = vsel %vm278, %v274, 0
        %v283 = vsel %vm278, %v275, 0
        %v286 = vsel %vm278, %v276, 0
        %v289 = vsel %vm278, %v277, 0
        %291 = vmatprep.subr.mxu0 0.0
        %292 = vmatpush1.msra.mxu0 %v264
        %293 = vmatprep.subr.mxu0 0.0
        %294 = vmatpush1.msra.mxu0 %v265
        %295 = vmatprep.subr.mxu0 0.0
        %296 = vmatpush1.msra.mxu0 0.0
        %297 = vmatprep.subr.mxu0 0.0
        %298 = vmatpush1.msra.mxu0 0.0
        %299 = vmatprep.subr.mxu0 0.0
        %300 = vmatpush1.msra.mxu0 0.0
        %301 = vmatprep.subr.mxu0 0.0
        %302 = vmatpush1.msra.mxu0 0.0
        %303 = vmatprep.subr.mxu0 0.0
        %304 = vmatpush1.msra.mxu0 0.0
        %305 = vmatprep.subr.mxu0 0.0
        %306 = vmatpush1.msra.mxu0 0.0
        %307 = vmatprep.subr.mxu0 0.0
        %308 = vmatpush1.msra.mxu0 0.0
        %309 = vmatprep.subr.mxu0 0.0
        %310 = vmatpush1.msra.mxu0 0.0
        %311 = vmatprep.subr.mxu0 0.0
        %312 = vmatpush1.msra.mxu0 0.0
        %313 = vmatprep.subr.mxu0 0.0
        %314 = vmatpush1.msra.mxu0 0.0
        %315 = vmatprep.subr.mxu0 0.0
        %316 = vmatpush1.msra.mxu0 0.0
        %317 = vmatprep.subr.mxu0 0.0
        %318 = vmatpush1.msra.mxu0 0.0
        %319 = vmatprep.subr.mxu0 0.0
        %320 = vmatpush1.msra.mxu0 0.0
        %321 = vmatprep.subr.mxu0 0.0
        %322 = vmatpush1.msra.mxu0 0.0
        %323 = vmatprep.subr.mxu0 0.0
        %324 = vmatpush1.msra.mxu0 0.0
        %325 = vmatprep.subr.mxu0 0.0
        %326 = vmatpush1.msra.mxu0 0.0
        %327 = vmatprep.subr.mxu0 0.0
        %328 = vmatpush1.msra.mxu0 0.0
        %329 = vmatprep.subr.mxu0 0.0
        %330 = vmatpush1.msra.mxu0 0.0
        %331 = vmatprep.subr.mxu0 0.0
        %332 = vmatpush1.msra.mxu0 0.0
        %333 = vmatprep.subr.mxu0 0.0
        %334 = vmatpush1.msra.mxu0 0.0
        %335 = vmatprep.subr.mxu0 0.0
        %336 = vmatpush1.msra.mxu0 0.0
        %337 = vmatprep.subr.mxu0 0.0
        %338 = vmatpush1.msra.mxu0 0.0
        %339 = vmatprep.subr.mxu0 0.0
        %340 = vmatpush1.msra.mxu0 0.0
        %341 = vmatprep.subr.mxu0 0.0
        %342 = vmatpush1.msra.mxu0 0.0
        %343 = vmatprep.subr.mxu0 0.0
        %344 = vmatpush1.msra.mxu0 0.0
        %345 = vmatprep.subr.mxu0 0.0
        %346 = vmatpush1.msra.mxu0 0.0
        %347 = vmatprep.subr.mxu0 0.0
        %348 = vmatpush1.msra.mxu0 0.0
        %349 = vmatprep.subr.mxu0 0.0
        %350 = vmatpush1.msra.mxu0 0.0
        %351 = vmatprep.subr.mxu0 0.0
        %352 = vmatpush1.msra.mxu0 0.0
        %353 = vmatprep.subr.mxu0 0.0
        %354 = vmatpush1.msra.mxu0 0.0
        %355 = vmatprep.mubr.f32.mxu0 0.0
        %356 = vmatmul.mubr.f32.gmra.mrb[0].mxu0 %v280
        %v357 = vpop.f32.mrb[0].mxu0
        %v358 = vadd.f32 0.0, %v357
        %v359 = vpop.f32.mrb[0].mxu0
        %360 = vmatprep.mubr.f32.mxu0 0.0
        %361 = vmatmul.mubr.f32.gmra.mrb[0].mxu0 %v283
        %v362 = vpop.f32.mrb[0].mxu0
        %v363 = vadd.f32 0.0, %v362
        %v364 = vpop.f32.mrb[0].mxu0
        %365 = vmatprep.mubr.f32.mxu0 0.0
        %366 = vmatmul.mubr.f32.gmra.mrb[0].mxu0 %v286
        %v367 = vpop.f32.mrb[0].mxu0
        %v368 = vadd.f32 0.0, %v367
        %v369 = vpop.f32.mrb[0].mxu0
        %370 = vmatprep.mubr.f32.mxu0 0.0
        %371 = vmatmul.mubr.f32.gmra.mrb[0].mxu0 %v289
        %v372 = vpop.f32.mrb[0].mxu0
        %v373 = vadd.f32 0.0, %v372
        %v374 = vpop.f32.mrb[0].mxu0
        %375 = vdwg.mxu0
        %v376 = vld [vmem:[%s2] sm:$0xff]
        %v377 = vld [vmem:[%s2 + $0x8] sm:$0xff]
        %v379 = vsel %vm278, %v358, 0
        %v382 = vsel %vm278, %v363, 0
        %384 = vmatprep.subr.mxu0 0.0
        %385 = vmatpush1.msra.mxu0 %v376
        %386 = vmatprep.subr.mxu0 0.0
        %387 = vmatpush1.msra.mxu0 %v377
        %388 = vmatprep.subr.mxu0 0.0
        %389 = vmatpush1.msra.mxu0 0.0
        %390 = vmatprep.subr.mxu0 0.0
        %391 = vmatpush1.msra.mxu0 0.0
        %392 = vmatprep.subr.mxu0 0.0
        %393 = vmatpush1.msra.mxu0 0.0
        %394 = vmatprep.subr.mxu0 0.0
        %395 = vmatpush1.msra.mxu0 0.0
        %396 = vmatprep.subr.mxu0 0.0
        %397 = vmatpush1.msra.mxu0 0.0
        %398 = vmatprep.subr.mxu0 0.0
        %399 = vmatpush1.msra.mxu0 0.0
        %400 = vmatprep.subr.mxu0 0.0
        %401 = vmatpush1.msra.mxu0 0.0
        %402 = vmatprep.subr.mxu0 0.0
        %403 = vmatpush1.msra.mxu0 0.0
        %404 = vmatprep.subr.mxu0 0.0
        %405 = vmatpush1.msra.mxu0 0.0
        %406 = vmatprep.subr.mxu0 0.0
        %407 = vmatpush1.msra.mxu0 0.0
        %408 = vmatprep.subr.mxu0 0.0
        %409 = vmatpush1.msra.mxu0 0.0
        %410 = vmatprep.subr.mxu0 0.0
        %411 = vmatpush1.msra.mxu0 0.0
        %412 = vmatprep.subr.mxu0 0.0
        %413 = vmatpush1.msra.mxu0 0.0
        %414 = vmatprep.subr.mxu0 0.0
        %415 = vmatpush1.msra.mxu0 0.0
        %416 = vmatprep.subr.mxu0 0.0
        %417 = vmatpush1.msra.mxu0 0.0
        %418 = vmatprep.subr.mxu0 0.0
        %419 = vmatpush1.msra.mxu0 0.0
        %420 = vmatprep.subr.mxu0 0.0
        %421 = vmatpush1.msra.mxu0 0.0
        %422 = vmatprep.subr.mxu0 0.0
        %423 = vmatpush1.msra.mxu0 0.0
        %424 = vmatprep.subr.mxu0 0.0
        %425 = vmatpush1.msra.mxu0 0.0
        %426 = vmatprep.subr.mxu0 0.0
        %427 = vmatpush1.msra.mxu0 0.0
        %428 = vmatprep.subr.mxu0 0.0
        %429 = vmatpush1.msra.mxu0 0.0
        %430 = vmatprep.subr.mxu0 0.0
        %431 = vmatpush1.msra.mxu0 0.0
        %432 = vmatprep.subr.mxu0 0.0
        %433 = vmatpush1.msra.mxu0 0.0
        %434 = vmatprep.subr.mxu0 0.0
        %435 = vmatpush1.msra.mxu0 0.0
        %436 = vmatprep.subr.mxu0 0.0
        %437 = vmatpush1.msra.mxu0 0.0
        %438 = vmatprep.subr.mxu0 0.0
        %439 = vmatpush1.msra.mxu0 0.0
        %440 = vmatprep.subr.mxu0 0.0
        %441 = vmatpush1.msra.mxu0 0.0
        %442 = vmatprep.subr.mxu0 0.0
        %443 = vmatpush1.msra.mxu0 0.0
        %444 = vmatprep.subr.mxu0 0.0
        %445 = vmatpush1.msra.mxu0 0.0
        %446 = vmatprep.subr.mxu0 0.0
        %447 = vmatpush1.msra.mxu0 0.0
        %448 = vmatprep.mubr.f32.mxu0 0.0
        %449 = vmatmul.mubr.f32.gmra.mrb[0].mxu0 %v379
        %v450 = vpop.f32.mrb[0].mxu0
        %v451 = vadd.f32 0.0, %v450
        %v452 = vpop.f32.mrb[0].mxu0
        %453 = vmatprep.mubr.f32.mxu0 0.0
        %454 = vmatmul.mubr.f32.gmra.mrb[0].mxu0 %v382
        %v455 = vpop.f32.mrb[0].mxu0
        %v456 = vadd.f32 0.0, %v455
        %v457 = vpop.f32.mrb[0].mxu0
        %458 = vdwg.mxu0
        %v459 = vmax.f32 %v451, 0.001
        %v460 = vmax.f32 %v456, 0.001
        %v461 = vlog2.pop %v459
        %v462 = vmul.f32 %v461, 0.6931472
        %v463 = vlog2.pop %v460
        %v464 = vmul.f32 %v463, 0.6931472
        %s465 = scalar_lea.vmem %s2, 16
        %v466 = vld [vmem:[%s465] sm:$0xff]
        %v467 = vld [vmem:[%s465 + $0x8] sm:$0xff]
        %v469 = vsel %vm278, %v368, 0
        %v472 = vsel %vm278, %v373, 0
        %474 = vmatprep.subr.mxu0 0.0
        %475 = vmatpush1.msra.mxu0 %v466
        %476 = vmatprep.subr.mxu0 0.0
        %477 = vmatpush1.msra.mxu0 %v467
        %478 = vmatprep.subr.mxu0 0.0
        %479 = vmatpush1.msra.mxu0 0.0
        %480 = vmatprep.subr.mxu0 0.0
        %481 = vmatpush1.msra.mxu0 0.0
        %482 = vmatprep.subr.mxu0 0.0
        %483 = vmatpush1.msra.mxu0 0.0
        %484 = vmatprep.subr.mxu0 0.0
        %485 = vmatpush1.msra.mxu0 0.0
        %486 = vmatprep.subr.mxu0 0.0
        %487 = vmatpush1.msra.mxu0 0.0
        %488 = vmatprep.subr.mxu0 0.0
        %489 = vmatpush1.msra.mxu0 0.0
        %490 = vmatprep.subr.mxu0 0.0
        %491 = vmatpush1.msra.mxu0 0.0
        %492 = vmatprep.subr.mxu0 0.0
        %493 = vmatpush1.msra.mxu0 0.0
        %494 = vmatprep.subr.mxu0 0.0
        %495 = vmatpush1.msra.mxu0 0.0
        %496 = vmatprep.subr.mxu0 0.0
        %497 = vmatpush1.msra.mxu0 0.0
        %498 = vmatprep.subr.mxu0 0.0
        %499 = vmatpush1.msra.mxu0 0.0
        %500 = vmatprep.subr.mxu0 0.0
        %501 = vmatpush1.msra.mxu0 0.0
        %502 = vmatprep.subr.mxu0 0.0
        %503 = vmatpush1.msra.mxu0 0.0
        %504 = vmatprep.subr.mxu0 0.0
        %505 = vmatpush1.msra.mxu0 0.0
        %506 = vmatprep.subr.mxu0 0.0
        %507 = vmatpush1.msra.mxu0 0.0
        %508 = vmatprep.subr.mxu0 0.0
        %509 = vmatpush1.msra.mxu0 0.0
        %510 = vmatprep.subr.mxu0 0.0
        %511 = vmatpush1.msra.mxu0 0.0
        %512 = vmatprep.subr.mxu0 0.0
        %513 = vmatpush1.msra.mxu0 0.0
        %514 = vmatprep.subr.mxu0 0.0
        %515 = vmatpush1.msra.mxu0 0.0
        %516 = vmatprep.subr.mxu0 0.0
        %517 = vmatpush1.msra.mxu0 0.0
        %518 = vmatprep.subr.mxu0 0.0
        %519 = vmatpush1.msra.mxu0 0.0
        %520 = vmatprep.subr.mxu0 0.0
        %521 = vmatpush1.msra.mxu0 0.0
        %522 = vmatprep.subr.mxu0 0.0
        %523 = vmatpush1.msra.mxu0 0.0
        %524 = vmatprep.subr.mxu0 0.0
        %525 = vmatpush1.msra.mxu0 0.0
        %526 = vmatprep.subr.mxu0 0.0
        %527 = vmatpush1.msra.mxu0 0.0
        %528 = vmatprep.subr.mxu0 0.0
        %529 = vmatpush1.msra.mxu0 0.0
        %530 = vmatprep.subr.mxu0 0.0
        %531 = vmatpush1.msra.mxu0 0.0
        %532 = vmatprep.subr.mxu0 0.0
        %533 = vmatpush1.msra.mxu0 0.0
        %534 = vmatprep.subr.mxu0 0.0
        %535 = vmatpush1.msra.mxu0 0.0
        %536 = vmatprep.subr.mxu0 0.0
        %537 = vmatpush1.msra.mxu0 0.0
        %538 = vmatprep.mubr.f32.mxu0 0.0
        %539 = vmatmul.mubr.f32.gmra.mrb[0].mxu0 %v469
        %v540 = vpop.f32.mrb[0].mxu0
        %v541 = vadd.f32 0.0, %v540
        %v542 = vpop.f32.mrb[0].mxu0
        %543 = vmatprep.mubr.f32.mxu0 0.0
        %544 = vmatmul.mubr.f32.gmra.mrb[0].mxu0 %v472
        %v545 = vpop.f32.mrb[0].mxu0
        %v546 = vadd.f32 0.0, %v545
        %v547 = vpop.f32.mrb[0].mxu0
        %548 = vdwg.mxu0
        %v549 = vmax.f32 %v541, 0.001
        %v550 = vmax.f32 %v546, 0.001
        %v551 = vlog2.pop %v549
        %v552 = vmul.f32 %v551, 0.6931472
        %v553 = vlog2.pop %v550
        %v554 = vmul.f32 %v553, 0.6931472
        %v555 = vadd.f32 %v462, %v552
        %v556 = vadd.f32 %v464, %v554
        %v557 = vmul.f32 %v555, 0.5
        %v558 = vmul.f32 %v556, 0.5
        %v559 = vsub.f32 %v267, %v557
        %v560 = vsub.f32 %v269, %v558
        %v561 = vsub.f32 %v271, %v559
        %v562 = vsub.f32 %v273, %v560
        %563 = vst.msk [vmem:[%s246] sm:$0xff] %vm278, %v559
        %564 = vst.msk [vmem:[%s246 + $0x8] sm:$0xff] %vm278, %v560
        %565 = vst.msk [vmem:[%s253] sm:$0xff] %vm278, %v561
        %566 = vst.msk [vmem:[%s253 + $0x8] sm:$0xff] %vm278, %v562
        %569 = vrot.lane.b32.xlu0 %v559, 127
        %v570 = vpop.permute.xlu0 %569
        %571 = vrot.lane.b32.xlu0 %v560, 127
        %v572 = vpop.permute.xlu0 %571
        %v575 = vsub.f32 %v559, %v570
        %v576 = vsub.f32 %v560, %v572
        %vm577 = vcmask 1046528
        %v578 = vrot.slane %v559, 1
        %v579 = vrot.slane %v560, 1
        %v580 = vsel %vm577, %v578, %v579
        %v583 = vsub.f32 %v559, %v580
        %v584 = vsub.f32 %v560, %v579
        %587 = vrot.lane.b32.xlu0 %v561, 127
        %v588 = vpop.permute.xlu0 %587
        %589 = vrot.lane.b32.xlu0 %v562, 127
        %v590 = vpop.permute.xlu0 %589
        %v593 = vsub.f32 %v561, %v588
        %v594 = vsub.f32 %v562, %v590
        %v595 = vrot.slane %v561, 1
        %v596 = vrot.slane %v562, 1
        %v597 = vsel %vm577, %v595, %v596
        %v600 = vsub.f32 %v561, %v597
        %v601 = vsub.f32 %v562, %v596
        %v602 = vand.u32 2147483647, %v575
        %v603 = vand.u32 2147483647, %v576
        %vm604 = vcmask 121856
        %v605 = vsel %vm604, %v602, 0.0
        %v606 = vsel %vm604, %v603, 0.0
        %v607 = vadd.f32 %v605, %v606
        %608 = vadd.xlane.f32.xlu0 %v607
        %v609 = vpop.xlane.xlu0 %608
        %v610 = vrot.slane %v609, 4
        %v611 = vadd.f32 %v609, %v610
        %v612 = vrot.slane %v611, 2
        %v613 = vadd.f32 %v611, %v612
        %v614 = vrot.slane %v613, 1
        %v615 = vadd.f32 %v613, %v614
        %s616 = vtos %v615
        %v617 = vand.u32 2147483647, %v583
        %v618 = vand.u32 2147483647, %v584
        %v619 = vsel %vm278, %v617, 0.0
        %vm620 = vcmask 129024
        %v621 = vsel %vm620, %v618, 0.0
        %v622 = vadd.f32 %v619, %v621
        %623 = vadd.xlane.f32.xlu0 %v622
        %v624 = vpop.xlane.xlu0 %623
        %v625 = vrot.slane %v624, 4
        %v626 = vadd.f32 %v624, %v625
        %v627 = vrot.slane %v626, 2
        %v628 = vadd.f32 %v626, %v627
        %v629 = vrot.slane %v628, 1
        %v630 = vadd.f32 %v628, %v629
        %s631 = vtos %v630
        %v632 = vand.u32 2147483647, %v593
        %v633 = vand.u32 2147483647, %v594
        %v634 = vsel %vm604, %v632, 0.0
        %v635 = vsel %vm604, %v633, 0.0
        %v636 = vadd.f32 %v634, %v635
        %637 = vadd.xlane.f32.xlu0 %v636
        %v638 = vpop.xlane.xlu0 %637
        %v639 = vrot.slane %v638, 4
        %v640 = vadd.f32 %v638, %v639
        %v641 = vrot.slane %v640, 2
        %v642 = vadd.f32 %v640, %v641
        %v643 = vrot.slane %v642, 1
        %v644 = vadd.f32 %v642, %v643
        %s645 = vtos %v644
        %v646 = vand.u32 2147483647, %v600
        %v647 = vand.u32 2147483647, %v601
        %v648 = vsel %vm278, %v646, 0.0
        %v649 = vsel %vm620, %v647, 0.0
        %v650 = vadd.f32 %v648, %v649
        %651 = vadd.xlane.f32.xlu0 %v650
        %v652 = vpop.xlane.xlu0 %651
        %v653 = vrot.slane %v652, 4
        %v654 = vadd.f32 %v652, %v653
        %v655 = vrot.slane %v654, 2
        %v656 = vadd.f32 %v654, %v655
        %v657 = vrot.slane %v656, 1
        %v658 = vadd.f32 %v656, %v657
        %s659 = vtos %v658
        %v660 = vlaneseq
        %v661 = vand.u32 %v660, 127
        %vm662 = vcmp.eq.s32.totalorder %v661, 0
        %v663 = vstv %s616
        %v664 = vsel %vm662, %v663, 0.0
        %vm665 = vcmp.eq.s32.totalorder %v661, 1
        %v666 = vstv %s631
        %v667 = vsel %vm665, %v666, 0.0
        %v668 = vadd.f32 %v664, %v667
        %vm669 = vcmp.eq.s32.totalorder %v661, 2
        %v670 = vstv %s645
        %v671 = vsel %vm669, %v670, 0.0
        %v672 = vadd.f32 %v668, %v671
        %vm673 = vcmp.eq.s32.totalorder %v661, 3
        %v674 = vstv %s659
        %v675 = vsel %vm673, %v674, 0.0
        %v676 = vadd.f32 %v672, %v675
        %677 = vst [vmem:[%s259] sm:$0x1] %v676
        %s678 = sand.u32 %s102, 1
        %s679 = scalar_lea.sflag [#allocation4], %s678
        %s680 = sand.u32 %s102, 1
        %s681 = smul.addr %s680, 16
        %s682 = scalar_lea.vmem [#allocation5], %s681
        %s683 = sand.u32 %s26, 1
        %s684 = scalar_lea.sflag [#allocation7], %s683
        %s685 = sand.u32 %s128, 1
        %s686 = smul.addr %s685, 16
        %s687 = scalar_lea.vmem [#allocation6], %s686
        %s688 = sand.u32 %s26, 1
        %s689 = scalar_lea.sflag [#allocation7], %s688
        %s690 = sand.u32 %s154, 1
        %s691 = scalar_lea.vmem [#allocation8], %s690
        // Predicated region
        $region37: #{tpu_custom_call.1} parent=31 // pred_check
          %p692 = pneg %p112
        $region38: #{tpu_custom_call.1} parent=31 // pred_check_branch
          %694 = sbr.rel (%p692) target = $region40
        $region39: #{tpu_custom_call.1} parent=31 // pred_region
          %s696 = ssub.s32 256, 256
          %697 = vsyncadd %s679, %s696
          %s698 = smul.addr %s26, 2
          %s699 = smul.addr %s698, 128
          %s700 = scalar_lea.hbm %s3, %s699
          %s701 = sshll.u32 %s682, 4
          %s702 = int_to_ptr.vmem [resolvable:$true] %s701
          %707 = dma.vmem_to_hbm [thread:$0]  %s702, 256, %s700, %s679, 128, 128, 8
        $region40: #{tpu_custom_call.1} parent=31 // pred_fallthru
          _
        // Predicated region
        $region41: #{tpu_custom_call.1} parent=31 // pred_check
          %p708 = pneg %p138
        $region42: #{tpu_custom_call.1} parent=31 // pred_check_branch
          %710 = sbr.rel (%p708) target = $region44
        $region43: #{tpu_custom_call.1} parent=31 // pred_region
          %s712 = ssub.s32 256, 256
          %713 = vsyncadd %s684, %s712
          %s714 = smul.addr %s26, 2
          %s715 = smul.addr %s714, 128
          %s716 = scalar_lea.hbm %s4, %s715
          %s717 = sshll.u32 %s687, 4
          %s718 = int_to_ptr.vmem [resolvable:$true] %s717
          %723 = dma.vmem_to_hbm [thread:$0]  %s718, 256, %s716, %s684, 128, 128, 8
        $region44: #{tpu_custom_call.1} parent=31 // pred_fallthru
          _
        // Predicated region
        $region45: #{tpu_custom_call.1} parent=31 // pred_check
          %p724 = pneg %p164
        $region46: #{tpu_custom_call.1} parent=31 // pred_check_branch
          %726 = sbr.rel (%p724) target = $region48
        $region47: #{tpu_custom_call.1} parent=31 // pred_region
          %s728 = ssub.s32 16, 16
          %729 = vsyncadd %s689, %s728
          %s730 = smul.addr %s26, 16
          %s731 = scalar_lea.hbm %s5, %s730
          %s733 = sshll.u32 %s691, 4
          %s734 = int_to_ptr.vmem [resolvable:$true] %s733
          %736 = dma.vmem_to_hbm [thread:$0]  %s734, 16, %s731, %s689
        $region48: #{tpu_custom_call.1} parent=31 // pred_fallthru
          _
      $region32: #{tpu_custom_call.1} parent=5 // pred_fallthru
        _
      %p737 = scmp.le.s32.totalorder 2, %s21
      // Predicated region
      $region49: #{tpu_custom_call.1} parent=5 // pred_check
        %p738 = pneg %p737
      $region50: #{tpu_custom_call.1} parent=5 // pred_check_branch
        %740 = sbr.rel (%p738) target = $region52
      $region51: #{tpu_custom_call.1} parent=5 // pred_region
        %s741 = ssub.s32 %s21, 2
        // Predicated region
        $region53: #{tpu_custom_call.1} parent=51 // pred_check
          %p742 = pneg %p118
        $region54: #{tpu_custom_call.1} parent=51 // pred_check_branch
          %744 = sbr.rel (%p742) target = $region56
        $region55: #{tpu_custom_call.1} parent=51 // pred_region
          %s745 = sand.u32 %s103, 1
          %s746 = scalar_lea.sflag [#allocation4], %s745
          %s747 = sand.u32 %s103, 1
          %s748 = smul.addr %s747, 16
          %s749 = scalar_lea.vmem [#allocation5], %s748
          %750 = dma.done %s746, 256
        $region56: #{tpu_custom_call.1} parent=51 // pred_fallthru
          _
        // Predicated region
        $region57: #{tpu_custom_call.1} parent=51 // pred_check
          %p751 = pneg %p144
        $region58: #{tpu_custom_call.1} parent=51 // pred_check_branch
          %753 = sbr.rel (%p751) target = $region60
        $region59: #{tpu_custom_call.1} parent=51 // pred_region
          %s754 = sand.u32 %s27, 1
          %s755 = scalar_lea.sflag [#allocation7], %s754
          %s756 = sand.u32 %s129, 1
          %s757 = smul.addr %s756, 16
          %s758 = scalar_lea.vmem [#allocation6], %s757
          %759 = dma.done %s755, 256
        $region60: #{tpu_custom_call.1} parent=51 // pred_fallthru
          _
        // Predicated region
        $region61: #{tpu_custom_call.1} parent=51 // pred_check
          %p760 = pneg %p170
        $region62: #{tpu_custom_call.1} parent=51 // pred_check_branch
          %762 = sbr.rel (%p760) target = $region64
        $region63: #{tpu_custom_call.1} parent=51 // pred_region
          %s763 = sand.u32 %s27, 1
          %s764 = scalar_lea.sflag [#allocation7], %s763
          %s765 = sand.u32 %s155, 1
          %s766 = scalar_lea.vmem [#allocation8], %s765
          %767 = dma.done %s764, 16
        $region64: #{tpu_custom_call.1} parent=51 // pred_fallthru
          _
      $region52: #{tpu_custom_call.1} parent=5 // pred_fallthru
        _
    $region6: #{tpu_custom_call.1} parent=1 // loop_footer
      %s25 = sadd.s32 1, %s21
    $region7: #{tpu_custom_call.1} parent=1 // loop_footer_branch
      %20 = sbr.rel target = $region3
    $region8: #{tpu_custom_call.1} parent=1 // loop_exit
      _
    %768 = vsyncpa [#allocation3], 1
    %s769 = scalar_lea.sflag [#allocation3], 1
    %770 = vsyncpa %s769, 1
    %771 = vsyncpa [#allocation4], 1
    %s772 = scalar_lea.sflag [#allocation4], 1
    %773 = vsyncpa %s772, 1
    %774 = vsyncpa [#allocation7], 1
    %s775 = scalar_lea.sflag [#allocation7], 1
    %776 = vsyncpa %s775, 1

</llo_original>
